<compile_context>
chip_gen: v7x
topology: tpu7x:2x2x1
jax: 0.10.0
libtpu: 0.0.40
codegen_flags: <defaults>
</compile_context>

<pallas_src>
import functools

import numpy as np
import jax
import jax.numpy as jnp
from jax import lax
from jax.experimental import pallas as pl
from jax.experimental.pallas import tpu as pltpu


def _round_up(x, m):
    return ((x + m - 1) // m) * m


def _vmem_limit_bytes():
    # Generation-aware budget: ~75% of physical VMEM, floored at 32 MiB
    # (always safe) and capped at 100 MiB (v5e/v6e have 128 MiB, v7x 64 MiB).
    try:
        cap = int(pltpu.get_tpu_info().vmem_capacity_bytes)
    except Exception:
        cap = 64 * 1024 * 1024
    return max(32 * 1024 * 1024, min(cap * 3 // 4, 100 * 1024 * 1024))


_VMEM_LIMIT = _vmem_limit_bytes()


# ==========================================================================
# Pallas kernel 1: tiled matmul with fused BN-affine / residual / ReLU
# ==========================================================================
def _mm_affine_kernel(*refs, relu, has_residual):
    if has_residual:
        a_ref, b_ref, s_ref, c_ref, r_ref, o_ref, acc_ref = refs
    else:
        a_ref, b_ref, s_ref, c_ref, o_ref, acc_ref = refs
        r_ref = None

    @pl.when(pl.program_id(2) == 0)
    def _init():
        acc_ref[...] = jnp.zeros_like(acc_ref)

    acc_ref[...] += jnp.dot(a_ref[...], b_ref[...],
                            preferred_element_type=jnp.float32)

    @pl.when(pl.program_id(2) == pl.num_programs(2) - 1)
    def _finalize():
        out = acc_ref[...] * s_ref[...] + c_ref[...]
        if has_residual:
            out = out + r_ref[...].astype(jnp.float32)
        if relu:
            out = jnp.maximum(out, 0.0)
        o_ref[...] = out.astype(o_ref.dtype)


def _pick_tile(dim, cap, granule):
    """Largest multiple of `granule` that divides `dim` and is <= cap."""
    t = max(granule, min(cap, dim))
    t = (t // granule) * granule
    while dim % t:
        t -= granule
    return t


def _choose_tiles(m, k, n):
    skinny = m <= 128                      # M-starved conv matmuls (common here)
    mp = _round_up(m, 16)                  # bf16 packs 2 rows / sublane
    tm = mp if skinny else _pick_tile(mp, 256, 16)
    if n <= 128:
        tn, np_ = n, n                     # do not pad Cout=64 layers to 128
    else:
        np_ = _round_up(n, 128)
        tn = _pick_tile(np_, 256, 128)     # 256-wide MXU tiles; >=2 N tiles @512
    kp = _round_up(k, 128)
    cap = 8192 if skinny else 1024         # skinny: collapse K to one big block
    while True:
        tk = _pick_tile(kp, cap, 128)
        foot = (2 * (tm * tk + tk * tn + 2 * tm * tn) * 2   # bf16, double-buf
                + tm * tn * 4 + 4 * tn * 4)                 # f32 acc + scale/bias
        if foot <= _VMEM_LIMIT // 2 or cap <= 256:
            break
        cap //= 2
    return tm, tn, tk, mp, np_, kp


@functools.partial(jax.jit, static_argnames=("relu",))
def pallas_matmul_affine(a, b, scale, bias, residual=None, relu=False):
    """relu?((a @ b) * scale + bias [+ residual]).  bf16 MXU in/out, f32 acc."""
    m, ka = a.shape
    kb, n = b.shape
    tm, tn, tk, mp, np_, kp = _choose_tiles(m, max(ka, kb), n)

    def pad2(x, rows, cols, dt):
        x = x.astype(dt)
        return jnp.pad(x, ((0, rows - x.shape[0]), (0, cols - x.shape[1])))

    has_res = residual is not None
    args = [pad2(a, mp, kp, jnp.bfloat16),
            pad2(b, kp, np_, jnp.bfloat16),
            pad2(scale.reshape(1, n), 1, np_, jnp.float32),
            pad2(bias.reshape(1, n), 1, np_, jnp.float32)]
    in_specs = [pl.BlockSpec((tm, tk), lambda i, j, kk: (i, kk)),
                pl.BlockSpec((tk, tn), lambda i, j, kk: (kk, j)),
                pl.BlockSpec((1, tn), lambda i, j, kk: (0, j)),
                pl.BlockSpec((1, tn), lambda i, j, kk: (0, j))]
    if has_res:
        args.append(pad2(residual, mp, np_, jnp.bfloat16))
        in_specs.append(pl.BlockSpec((tm, tn), lambda i, j, kk: (i, j)))

    out = pl.pallas_call(
        functools.partial(_mm_affine_kernel, relu=relu, has_residual=has_res),
        grid=(mp // tm, np_ // tn, kp // tk),
        in_specs=in_specs,
        out_specs=pl.BlockSpec((tm, tn), lambda i, j, kk: (i, j)),
        out_shape=jax.ShapeDtypeStruct((mp, np_), jnp.bfloat16),
        scratch_shapes=[pltpu.VMEM((tm, tn), jnp.float32)],
        compiler_params=pltpu.CompilerParams(
            dimension_semantics=("parallel", "parallel", "arbitrary"),
            vmem_limit_bytes=_VMEM_LIMIT),
    )(*args)
    if mp == m and np_ == n:
        return out
    return out[:m, :n]


# ==========================================================================
# Pallas kernel 2: batched masked average pooling (getFeatures)
# ==========================================================================
def _masked_avg_kernel(m_ref, f_ref, o_ref):
    m = m_ref[...]                                              # (Nm, P) bf16
    num = jnp.dot(m, f_ref[...], preferred_element_type=jnp.float32)  # (Nm, C)
    den = jnp.sum(m.astype(jnp.float32), axis=1, keepdims=True) + 1e-5
    o_ref[...] = num / den                                      # exact division


@jax.jit
def pallas_masked_avg(masks, feats):
    """masks: (B, Nm, P), feats: (B, P, C) -> (B, Nm, C)."""
    bsz, nm, pdim = masks.shape
    c = feats.shape[2]
    return pl.pallas_call(
        _masked_avg_kernel,
        grid=(bsz,),
        in_specs=[pl.BlockSpec((pl.Squeezed(), nm, pdim), lambda i: (i, 0, 0)),
                  pl.BlockSpec((pl.Squeezed(), pdim, c), lambda i: (i, 0, 0))],
        out_specs=pl.BlockSpec((pl.Squeezed(), nm, c), lambda i: (i, 0, 0)),
        out_shape=jax.ShapeDtypeStruct((bsz, nm, c), jnp.float32),
        compiler_params=pltpu.CompilerParams(
            dimension_semantics=("parallel",),
            vmem_limit_bytes=_VMEM_LIMIT),
    )(masks.astype(jnp.bfloat16), feats.astype(jnp.bfloat16))


# ==========================================================================
# Pallas kernel 3: batched cosine distance (calDist), lane-dense (Np, P) out
# ==========================================================================
def _cos_dist_kernel(p_ref, x_ref, ipn_ref, ixn_ref, o_ref, *, scaler):
    # (Np, C) x (P, C) -> (Np, P): contraction on both last dims (MXU).
    dots = lax.dot_general(p_ref[...], x_ref[...],
                           (((1,), (1,)), ((), ())),
                           preferred_element_type=jnp.float32)
    o_ref[...] = dots * ipn_ref[...] * ixn_ref[...] * scaler


@jax.jit
def pallas_cos_dist(x, protos):
    """x: (B, P, C), protos: (B, Np, C) -> (B, Np, P) cosine-sim * 20."""
    bsz, pdim, c = x.shape
    npz = protos.shape[1]
    xf = x.astype(jnp.float32)
    pf = protos.astype(jnp.float32)
    # exact f32 norms computed outside the kernel (review correctness item)
    inv_xn = lax.rsqrt(jnp.maximum(jnp.sum(xf * xf, axis=-1), 1e-16))[:, None, :]
    inv_pn = lax.rsqrt(jnp.maximum(jnp.sum(pf * pf, axis=-1), 1e-16))[:, :, None]
    return pl.pallas_call(
        functools.partial(_cos_dist_kernel, scaler=20.0),
        grid=(bsz,),
        in_specs=[pl.BlockSpec((pl.Squeezed(), npz, c), lambda i: (i, 0, 0)),
                  pl.BlockSpec((pl.Squeezed(), pdim, c), lambda i: (i, 0, 0)),
                  pl.BlockSpec((pl.Squeezed(), npz, 1), lambda i: (i, 0, 0)),
                  pl.BlockSpec((pl.Squeezed(), 1, pdim), lambda i: (i, 0, 0))],
        out_specs=pl.BlockSpec((pl.Squeezed(), npz, pdim), lambda i: (i, 0, 0)),
        out_shape=jax.ShapeDtypeStruct((bsz, npz, pdim), jnp.float32),
        compiler_params=pltpu.CompilerParams(
            dimension_semantics=("parallel",),
            vmem_limit_bytes=_VMEM_LIMIT),
    )(protos.astype(jnp.bfloat16), x.astype(jnp.bfloat16), inv_pn, inv_xn)


# ==========================================================================
# Pallas kernel 4: correlation via shifted elementwise products (no mask tensor)
# ==========================================================================
def _corr_kernel(f1_ref, f2p_ref, o_ref, *, h, w, r, inv_sqrt_c):
    side = 2 * r + 1
    f1 = f1_ref[...].astype(jnp.float32)        # (H, W, C)
    f2p = f2p_ref[...]                          # (H+2r, W+2r, C) bf16
    outs = []
    for ch in range(side * side):
        a_idx, b_idx = ch // side, ch % side    # dx = a_idx - r, dy = b_idx - r
        f2s = f2p[b_idx:b_idx + h, a_idx:a_idx + w, :].astype(jnp.float32)
        outs.append(jnp.sum(f1 * f2s, axis=-1) * inv_sqrt_c)   # (H, W)
    o_ref[...] = jnp.stack(outs, axis=0)        # (Nc, H, W)


@functools.partial(jax.jit, static_argnames=("r",))
def correlation(fmap1, fmap2, r):
    """fmap*: (B, H, W, C) NHWC -> (B, (2r+1)^2, H, W).
    Channel ch = a*(2r+1)+b equals torch Correlation's grid_sample of
    corr[:, i, j, i+(b-r), j+(a-r)] / sqrt(C), zero outside bounds."""
    b, h, w, c = fmap1.shape
    nc = (2 * r + 1) ** 2
    f1 = fmap1.astype(jnp.bfloat16)
    f2p = jnp.pad(fmap2.astype(jnp.bfloat16), ((0, 0), (r, r), (r, r), (0, 0)))
    return pl.pallas_call(
        functools.partial(_corr_kernel, h=h, w=w, r=r,
                          inv_sqrt_c=1.0 / float(np.sqrt(c))),
        grid=(b,),
        in_specs=[pl.BlockSpec((pl.Squeezed(), h, w, c),
                               lambda i: (i, 0, 0, 0)),
                  pl.BlockSpec((pl.Squeezed(), h + 2 * r, w + 2 * r, c),
                               lambda i: (i, 0, 0, 0))],
        out_specs=pl.BlockSpec((pl.Squeezed(), nc, h, w),
                               lambda i: (i, 0, 0, 0)),
        out_shape=jax.ShapeDtypeStruct((b, nc, h, w), jnp.float32),
        compiler_params=pltpu.CompilerParams(
            dimension_semantics=("parallel",),
            vmem_limit_bytes=_VMEM_LIMIT),
    )(f1, f2p)


# ==========================================================================
# JAX glue: NHWC conv (im2col + Pallas matmul), pooling, bilinear resize
# ==========================================================================
def im2col_nhwc(x, k, stride, pad):
    """x: (N, H, W, C) -> (N*Ho*Wo, k*k*C) with (di, dj, c) K-ordering."""
    n, h, w, c = x.shape
    if pad:
        x = jnp.pad(x, ((0, 0), (pad, pad), (pad, pad), (0, 0)))
    ho = (h + 2 * pad - k) // stride + 1
    wo = (w + 2 * pad - k) // stride + 1
    if k == 1 and stride == 1:
        return x.reshape(n * ho * wo, c), ho, wo
    cols = [x[:, di:di + stride * ho:stride, dj:dj + stride * wo:stride, :]
            for di in range(k) for dj in range(k)]
    patches = jnp.stack(cols, axis=3)            # (N, Ho, Wo, k*k, C)
    return patches.reshape(n * ho * wo, k * k * c), ho, wo


@functools.partial(jax.jit, static_argnames=("k", "stride", "pad", "relu"))
def _conv_impl(x, wt, scale, bias, residual, *, k, stride, pad, relu):
    n = x.shape[0]
    cout = wt.shape[1]
    a, ho, wo = im2col_nhwc(x, k, stride, pad)
    res = None
    if residual is not None:
        res = residual.reshape(n * ho * wo, cout)
    out = pallas_matmul_affine(a, wt, scale, bias, residual=res, relu=relu)
    return out.reshape(n, ho, wo, cout)


def conv_bn_act(x, p, stride, pad, relu, residual=None):
    return _conv_impl(x, p["wt"], p["scale"], p["bias"], residual,
                      k=p["ksize"], stride=stride, pad=pad, relu=relu)


def max_pool_3x3_s2_p1_nhwc(x):
    return lax.reduce_window(
        x, jnp.array(-jnp.inf, x.dtype), lax.max,
        window_dimensions=(1, 3, 3, 1), window_strides=(1, 2, 2, 1),
        padding=((0, 0), (1, 1), (1, 1), (0, 0)))


def avg_pool_nhwc(x, s):
    n, h, w, c = x.shape
    return x.reshape(n, h // s, s, w // s, s, c).mean(axis=(2, 4))


@functools.lru_cache(maxsize=None)
def _interp_matrix(out_size, in_size):
    """Row-stochastic matrix matching F.interpolate(align_corners=False)."""
    o = np.arange(out_size, dtype=np.float64)
    src = np.maximum((o + 0.5) * (in_size / out_size) - 0.5, 0.0)
    i0 = np.minimum(np.floor(src).astype(np.int64), in_size - 1)
    i1 = np.minimum(i0 + 1, in_size - 1)
    w1 = (src - i0).astype(np.float32)
    w0 = 1.0 - w1
    mat = np.zeros((out_size, in_size), np.float32)
    mat[np.arange(out_size), i0] += w0
    mat[np.arange(out_size), i1] += w1
    return jnp.asarray(mat)


def bilinear_resize_nhwc(x, out_h, out_w):
    h, w = x.shape[1:3]
    wy = _interp_matrix(out_h, h)
    wx = _interp_matrix(out_w, w)
    return jnp.einsum("ah,nhwc,bw->nabc", wy, x.astype(jnp.float32), wx)


def bilinear_resize_nchw(x, out_h, out_w):
    h, w = x.shape[-2:]
    wy = _interp_matrix(out_h, h)
    wx = _interp_matrix(out_w, w)
    return jnp.einsum("ah,nchw,bw->ncab", wy, x.astype(jnp.float32), wx)


# ==========================================================================
# Parameters (random init; eval-mode BN folded into scale/bias)
# ==========================================================================
class ParamGen:
    def __init__(self, seed=0):
        self._key = jax.random.PRNGKey(seed)

    def normal(self, shape, std=0.05):
        self._key, sub = jax.random.split(self._key)
        return jax.random.normal(sub, shape, dtype=jnp.float32) * std


def make_conv_bn(pg, cin, cout, k, bias):
    w = pg.normal((cout, cin, k, k))
    b = pg.normal((cout,)) if bias else jnp.zeros((cout,), jnp.float32)
    # eval-mode BN (mean=0, var=1, gamma=1, beta=0) folded:
    scale = jnp.full((cout,), 1.0 / np.sqrt(1.0 + 1e-5), jnp.float32)
    kdim = cin * k * k
    kpad = _round_up(kdim, 128)
    # pre-transposed (kh, kw, cin, cout) -> (kdim, cout), K-padded, bf16
    w_hwio = jnp.transpose(w, (2, 3, 1, 0)).reshape(kdim, cout)
    wt = jnp.zeros((kpad, cout), jnp.bfloat16)
    wt = wt.at[:kdim, :].set(w_hwio.astype(jnp.bfloat16))
    return {"wt": wt, "scale": scale, "bias": b * scale, "ksize": k}


def make_basic_block(pg, cin, cout, downsample):
    p = {"conv1": make_conv_bn(pg, cin, cout, 3, bias=False),
         "conv2": make_conv_bn(pg, cout, cout, 3, bias=False)}
    if downsample:
        p["ds"] = make_conv_bn(pg, cin, cout, 1, bias=True)
    return p


def make_resnet18_params(pg):
    blocks = [
        make_basic_block(pg, 64, 64, False),   # layer1
        make_basic_block(pg, 64, 64, False),
        make_basic_block(pg, 64, 128, True),   # appended BasicBlock(64,128)
        make_basic_block(pg, 128, 128, False),
        make_basic_block(pg, 128, 256, True),
        make_basic_block(pg, 256, 256, False),
        make_basic_block(pg, 256, 512, True),
        make_basic_block(pg, 512, 512, False),
    ]
    return {"conv1": make_conv_bn(pg, 3, 64, 7, bias=False), "blocks": blocks}


def make_cre_params(pg, num_feat, radius):
    win = (2 * radius + 1) ** 2
    return {"w_k": make_conv_bn(pg, num_feat, num_feat, 3, bias=True),
            "w_q": make_conv_bn(pg, num_feat, num_feat, 3, bias=True),
            "q": make_conv_bn(pg, num_feat + win, 64, 1, bias=True)}


# ==========================================================================
# Model pieces (all NHWC)
# ==========================================================================
def basic_block(x, p):
    identity = x
    if "ds" in p:
        identity = conv_bn_act(x, p["ds"], stride=1, pad=0, relu=False)
    out = conv_bn_act(x, p["conv1"], stride=1, pad=1, relu=True)
    # residual add + final ReLU fused into conv2's matmul epilogue
    return conv_bn_act(out, p["conv2"], stride=1, pad=1, relu=True,
                       residual=identity)


def resnet18_forward(params, x):
    x = conv_bn_act(x, params["conv1"], stride=2, pad=3, relu=True)
    x = max_pool_3x3_s2_p1_nhwc(x)
    for blk in params["blocks"]:
        x = basic_block(x, blk)
    return {"d4": x}


def cre_forward(p, fm1, fm2, radius):
    fm1 = conv_bn_act(fm1, p["w_k"], stride=1, pad=1, relu=True)
    fm2 = conv_bn_act(fm2, p["w_q"], stride=1, pad=1, relu=True)
    corr = correlation(fm1, fm2, radius)                        # (B, Nc, h, w)
    corr = jnp.transpose(corr, (0, 2, 3, 1)).astype(jnp.bfloat16)   # -> NHWC
    x = jnp.concatenate([corr, fm1], axis=-1)
    return conv_bn_act(x, p["q"], stride=1, pad=0, relu=True)


def compute_prototypes(supp_feat, fore_mask_t, back_mask_t):
    """Batched getFeatures + getPrototype.  supp_feat: (B, h, w, C) NHWC;
    masks: (Wa, Sh, B, H, W).  Returns (B, 1+Wa, C) = [bg, fg_0, ...]."""
    n_ways, n_shots, bsz, hh, ww = fore_mask_t.shape
    c = supp_feat.shape[-1]
    f_up = bilinear_resize_nhwc(supp_feat, hh, ww)              # (B, H, W, C)
    f_pc = f_up.reshape(bsz, hh * ww, c)                        # (B, P, C)
    fg = fore_mask_t.transpose(2, 0, 1, 3, 4).reshape(bsz, n_ways * n_shots,
                                                      hh * ww)
    bg = back_mask_t.transpose(2, 0, 1, 3, 4).reshape(bsz, n_ways * n_shots,
                                                      hh * ww)
    masks = jnp.concatenate([fg, bg], axis=1)                   # (B, 2*Wa*Sh, P)
    pooled = pallas_masked_avg(masks, f_pc)                     # (B, 2*Wa*Sh, C)
    fg_p = pooled[:, :n_ways * n_shots].reshape(bsz, n_ways, n_shots, c
                                                ).mean(axis=2)
    bg_p = pooled[:, n_ways * n_shots:].reshape(bsz, n_ways, n_shots, c
                                                ).mean(axis=2).mean(axis=1)
    return jnp.concatenate([bg_p[:, None, :], fg_p], axis=1)


@functools.partial(jax.jit, static_argnames=("img_size",))
def predict_logits(qry_feats, protos, img_size):
    """qry_feats: (Nq, B, h, w, C) NHWC, protos: (B, Np, C) ->
    (Nq*B, Np, H, W) logits matching the torch stacking/view order."""
    nq, bsz, h, w, c = qry_feats.shape
    npz = protos.shape[1]
    x = qry_feats.transpose(1, 0, 2, 3, 4).reshape(bsz, nq * h * w, c)
    d = pallas_cos_dist(x, protos)                              # (B, Np, Nq*h*w)
    pred = d.reshape(bsz, npz, nq, h, w).transpose(2, 0, 1, 3, 4)
    pred = pred.reshape(nq * bsz, npz, h, w)
    return bilinear_resize_nchw(pred, img_size[0], img_size[1])


def rp_net_forward(params, cfg, backbone_cfg,
                   supp_imgs, fore_mask, back_mask, qry_imgs,
                   appr_query_labels):
    del cfg  # 'align' is False; backbone fixed to resnet
    n_ways = len(supp_imgs)
    n_shots = len(supp_imgs[0])
    n_queries = len(qry_imgs)
    batch_size = supp_imgs[0][0].shape[0]
    img_size = tuple(qry_imgs[0].shape[-2:])
    scale = backbone_cfg.get("scale", 4)
    num_iter = backbone_cfg["n_iter_refinement"]
    radius = backbone_cfg["mask_refinement_correlation_radius"]

    to_nhwc = lambda t: jnp.transpose(t, (0, 2, 3, 1))

    # --- encode support + query in ONE backbone pass (eval-mode BN => identical)
    supp_concat = jnp.concatenate(
        [jnp.concatenate(way, axis=0) for way in supp_imgs], axis=0)
    qry_concat = jnp.concatenate(qry_imgs, axis=0)
    n_supp = supp_concat.shape[0]
    all_in = to_nhwc(jnp.concatenate([supp_concat, qry_concat], axis=0))
    all_fts = resnet18_forward(params["encoder"], all_in)["d4"]   # (Nt,h,w,C)
    h_f, w_f = all_fts.shape[1:3]
    supp_fts = all_fts[:n_supp].reshape(n_ways, n_shots, batch_size,
                                        h_f, w_f, -1)
    qry_fts = all_fts[n_supp:].reshape(n_queries, batch_size, h_f, w_f, -1)

    fore_mask_t = jnp.stack([jnp.stack(way, axis=0) for way in fore_mask],
                            axis=0)
    back_mask_t = jnp.stack([jnp.stack(way, axis=0) for way in back_mask],
                            axis=0)

    qry_mask = avg_pool_nhwc(appr_query_labels[..., None], scale)   # (B,h,w,1)
    supp_mask = avg_pool_nhwc(fore_mask_t[0, 0][..., None], scale)

    # relation encoding of support features (use_relation_enc == 'relation')
    sm = supp_mask.astype(jnp.bfloat16)
    supp_cre = cre_forward(params["cre"], supp_fts[0, 0] * sm,
                           supp_fts[0, 0] * (1.0 - sm), radius)[None, None]

    # prototypes depend only on (fixed) support features & masks => compute once
    protos = compute_prototypes(supp_cre[0, 0], fore_mask_t, back_mask_t)

    inter_qry_fts = qry_fts
    refinement = {}
    for it in range(num_iter):
        qm = qry_mask.astype(jnp.bfloat16)
        inter_qry_fts = cre_forward(params["cre"], qry_fts[0] * qm,
                                    qry_fts[0] * (1.0 - qm), radius)[None]
        logits = predict_logits(inter_qry_fts, protos, img_size)
        refinement[it] = logits
        soft = jax.nn.softmax(logits, axis=1)[:, 1]
        if not backbone_cfg["soft_mask"]:
            soft = (soft > 0.5).astype(jnp.float32)
        qry_mask = avg_pool_nhwc(soft[..., None], scale)

    outputs = predict_logits(inter_qry_fts, protos, img_size)
    align_loss = 0.0   # config['align'] is False (and eval mode)
    return {"output": outputs,
            "align_loss": align_loss / batch_size,
            "refinement": refinement}


# ==========================================================================
if __name__ == "__main__":
    cfg = {"align": False, "backbone": "resnet"}
    backbone_cfg = {"scale": 4, "n_iter_refinement": 1,
                    "use_relation_enc": "relation",
                    "mask_refinement_correlation_radius": 2,
                    "soft_mask": False}
    num_feat = 512  # ResNet18 backbone output channels

    pg = ParamGen(0)
    params = {"encoder": make_resnet18_params(pg),
              "cre": make_cre_params(
                  pg, num_feat,
                  backbone_cfg["mask_refinement_correlation_radius"])}

    key = jax.random.PRNGKey(0)
    k1, k2, k3, k4 = jax.random.split(key, 4)
    B, H, W = 2, 16, 16
    supp_imgs = [[jax.random.normal(k1, (B, 3, H, W), jnp.float32)]]  # way x shot
    qry_imgs = [jax.random.normal(k2, (B, 3, H, W), jnp.float32)]     # n_queries
    fm = (jax.random.uniform(k3, (B, H, W)) > 0.5).astype(jnp.float32)
    fore_mask = [[fm]]
    back_mask = [[1.0 - fm]]
    appr_query_labels = (jax.random.uniform(k4, (B, H, W)) > 0.5
                         ).astype(jnp.float32)

    out = rp_net_forward(params, cfg, backbone_cfg,
                         supp_imgs, fore_mask, back_mask, qry_imgs,
                         appr_query_labels)
    jax.block_until_ready(out["output"])
    jax.block_until_ready(out["refinement"][0])
    assert out["output"].shape == (1 * B, 2, H, W)
    print("KERNEL_OK")
</pallas_src>

<mosaic_0001>
module attributes {stable_mosaic.version = 11 : i64} {
  func.func @_mm_affine_kernel(%arg0: i32, %arg1: i32, %arg2: i32, %arg3: memref<256x256xbf16, #tpu.memory_space<vmem>>, %arg4: memref<256x64xbf16, #tpu.memory_space<vmem>>, %arg5: memref<1x64xf32, #tpu.memory_space<vmem>>, %arg6: memref<1x64xf32, #tpu.memory_space<vmem>>, %arg7: memref<256x64xbf16, #tpu.memory_space<vmem>>, %arg8: memref<256x64xf32, #tpu.memory_space<vmem>>) attributes {dimension_semantics = [#tpu.dimension_semantics<parallel>, #tpu.dimension_semantics<parallel>, #tpu.dimension_semantics<arbitrary>], iteration_bounds = array<i64: 1, 1, 1>, scalar_prefetch = 0 : i64, scratch_operands = 1 : i64, tpu.core_type = #tpu.core_type<tc>, window_params = [{transform_indices = @transform_0, window_bounds = array<i64: 256, 256>}, {transform_indices = @transform_1, window_bounds = array<i64: 256, 64>}, {transform_indices = @transform_2, window_bounds = array<i64: 1, 64>}, {transform_indices = @transform_3, window_bounds = array<i64: 1, 64>}, {transform_indices = @transform_4, window_bounds = array<i64: 256, 64>}]} {
    %c0_i32 = arith.constant 0 : i32
    %0 = arith.cmpi eq, %arg2, %c0_i32 : i32
    %1 = arith.extui %0 : i1 to i32
    %c0_i32_0 = arith.constant 0 : i32
    %2 = arith.cmpi ne, %1, %c0_i32_0 : i32
    scf.if %2 {
      %cst_10 = arith.constant 0.000000e+00 : f32
      %12 = vector.broadcast %cst_10 : f32 to vector<256x64xf32>
      %c0_11 = arith.constant 0 : index
      %c0_12 = arith.constant 0 : index
      %13 = vector.load %arg8[%c0_11, %c0_12] : memref<256x64xf32, #tpu.memory_space<vmem>>, vector<256x64xf32>
      tpu.vector_store %arg8[%c0_11, %c0_12], %12 {strides = array<i32>} : memref<256x64xf32, #tpu.memory_space<vmem>>, vector<256x64xf32>,
    } else {
    }
    %c0 = arith.constant 0 : index
    %c0_1 = arith.constant 0 : index
    %3 = vector.load %arg8[%c0, %c0_1] : memref<256x64xf32, #tpu.memory_space<vmem>>, vector<256x64xf32>
    %c0_2 = arith.constant 0 : index
    %c0_3 = arith.constant 0 : index
    %4 = vector.load %arg3[%c0_2, %c0_3] : memref<256x256xbf16, #tpu.memory_space<vmem>>, vector<256x256xbf16>
    %c0_4 = arith.constant 0 : index
    %c0_5 = arith.constant 0 : index
    %5 = vector.load %arg4[%c0_4, %c0_5] : memref<256x64xbf16, #tpu.memory_space<vmem>>, vector<256x64xbf16>
    %cst = arith.constant dense<0.000000e+00> : vector<256x64xf32>
    %6 = tpu.matmul %4, %5, %cst {dimension_numbers = #tpu.dot_dimension_numbers<[1], [0], [0], [1], [0, 0, 1, 1], [], []>} : vector<256x256xbf16>, vector<256x64xbf16>, vector<256x64xf32> -> vector<256x64xf32>
    %7 = arith.addf %3, %6 : vector<256x64xf32>
    %c0_6 = arith.constant 0 : index
    %c0_7 = arith.constant 0 : index
    %8 = vector.load %arg8[%c0_6, %c0_7] : memref<256x64xf32, #tpu.memory_space<vmem>>, vector<256x64xf32>
    tpu.vector_store %arg8[%c0_6, %c0_7], %7 {strides = array<i32>} : memref<256x64xf32, #tpu.memory_space<vmem>>, vector<256x64xf32>,
    %c0_i32_8 = arith.constant 0 : i32
    %9 = arith.cmpi eq, %arg2, %c0_i32_8 : i32
    %10 = arith.extui %9 : i1 to i32
    %c0_i32_9 = arith.constant 0 : i32
    %11 = arith.cmpi ne, %10, %c0_i32_9 : i32
    scf.if %11 {
      %c0_10 = arith.constant 0 : index
      %c0_11 = arith.constant 0 : index
      %12 = vector.load %arg8[%c0_10, %c0_11] : memref<256x64xf32, #tpu.memory_space<vmem>>, vector<256x64xf32>
      %c0_12 = arith.constant 0 : index
      %c0_13 = arith.constant 0 : index
      %13 = vector.load %arg5[%c0_12, %c0_13] : memref<1x64xf32, #tpu.memory_space<vmem>>, vector<1x64xf32>
      %14 = vector.broadcast %13 : vector<1x64xf32> to vector<256x64xf32>
      %15 = arith.mulf %12, %14 : vector<256x64xf32>
      %c0_14 = arith.constant 0 : index
      %c0_15 = arith.constant 0 : index
      %16 = vector.load %arg6[%c0_14, %c0_15] : memref<1x64xf32, #tpu.memory_space<vmem>>, vector<1x64xf32>
      %17 = vector.broadcast %16 : vector<1x64xf32> to vector<256x64xf32>
      %18 = arith.addf %15, %17 : vector<256x64xf32>
      %cst_16 = arith.constant 0.000000e+00 : f32
      %19 = vector.broadcast %cst_16 : f32 to vector<256x64xf32>
      %20 = arith.maximumf %18, %19 : vector<256x64xf32>
      %21 = arith.truncf %20 : vector<256x64xf32> to vector<256x64xbf16>
      %c0_17 = arith.constant 0 : index
      %c0_18 = arith.constant 0 : index
      %22 = vector.load %arg7[%c0_17, %c0_18] : memref<256x64xbf16, #tpu.memory_space<vmem>>, vector<256x64xbf16>
      tpu.vector_store %arg7[%c0_17, %c0_18], %21 {strides = array<i32>} : memref<256x64xbf16, #tpu.memory_space<vmem>>, vector<256x64xbf16>,
    } else {
    }
    return
  }
  func.func @transform_0(%arg0: i32, %arg1: i32, %arg2: i32) -> (i32, i32) {
    %c0_i32 = arith.constant 0 : i32
    return %arg0, %arg2 : i32, i32
  }
  func.func @transform_1(%arg0: i32, %arg1: i32, %arg2: i32) -> (i32, i32) {
    %c0_i32 = arith.constant 0 : i32
    return %arg2, %arg1 : i32, i32
  }
  func.func @transform_2(%arg0: i32, %arg1: i32, %arg2: i32) -> (i32, i32) {
    %c0_i32 = arith.constant 0 : i32
    %c0_i32_0 = arith.constant 0 : i32
    return %c0_i32, %arg1 : i32, i32
  }
  func.func @transform_3(%arg0: i32, %arg1: i32, %arg2: i32) -> (i32, i32) {
    %c0_i32 = arith.constant 0 : i32
    %c0_i32_0 = arith.constant 0 : i32
    return %c0_i32, %arg1 : i32, i32
  }
  func.func @transform_4(%arg0: i32, %arg1: i32, %arg2: i32) -> (i32, i32) {
    %c0_i32 = arith.constant 0 : i32
    return %arg0, %arg1 : i32, i32
  }
}

</mosaic_0001>

<llo_original>
// kernel: pallas_matmul_affine.1
$region0: #{pallas_matmul_affine.1}
  #allocation0 [shape = 'u32[]', space=smem, size = 0x4, offset = 0x4, fixed_abs, tag = 'smem constant byte address 0x4 - core index']
  #allocation1 [shape = 'u32[144,128]{1,0:T(1,128)}', space=vmem, size = 0x12000, scoped, tag = 'internal scratch']
  #allocation2 [shape = 'f32[256,64]{1,0:T(8,128)}', space=vmem, size = 0x20000, scoped, tag = 'scratch operand']
  %s0 = inlined_call_operand.vmem [shape: bf16[256,256], index: 0, kind: input, shape index: {}]
  %s1 = inlined_call_operand.vmem [shape: bf16[256,64], index: 1, kind: input, shape index: {}]
  %s2 = inlined_call_operand.vmem [shape: f32[1,64], index: 2, kind: input, shape index: {}]
  %s3 = inlined_call_operand.vmem [shape: f32[1,64], index: 3, kind: input, shape index: {}]
  %s4 = inlined_call_operand.vmem [shape: bf16[256,64], index: 4, kind: output, shape index: {}]
  %s5 = sld [smem:[#allocation0]]
  $region34: #{pallas_matmul_affine.1} parent=0
    _
  %s7 = ssub.s32 1, %s5
  %s8 = scalar_select 0, %s7, %s5
  // Predicated region
  $region2: #{pallas_matmul_affine.1} parent=0 // pred_check
    _
  $region3: #{pallas_matmul_affine.1} parent=0 // pred_check_branch
    %10 = sbr.rel (0) target = $region5
  $region4: #{pallas_matmul_affine.1} parent=0 // pred_region
    _
  $region5: #{pallas_matmul_affine.1} parent=0 // pred_fallthru
    _
  // Predicated region
  $region6: #{pallas_matmul_affine.1} parent=0 // pred_check
    _
  $region7: #{pallas_matmul_affine.1} parent=0 // pred_check_branch
    %12 = sbr.rel (0) target = $region9
  $region8: #{pallas_matmul_affine.1} parent=0 // pred_region
    _
  $region9: #{pallas_matmul_affine.1} parent=0 // pred_fallthru
    _
  // Predicated region
  $region10: #{pallas_matmul_affine.1} parent=0 // pred_check
    _
  $region11: #{pallas_matmul_affine.1} parent=0 // pred_check_branch
    %14 = sbr.rel (0) target = $region13
  $region12: #{pallas_matmul_affine.1} parent=0 // pred_region
    _
  $region13: #{pallas_matmul_affine.1} parent=0 // pred_fallthru
    _
  // Predicated region
  $region14: #{pallas_matmul_affine.1} parent=0 // pred_check
    _
  $region15: #{pallas_matmul_affine.1} parent=0 // pred_check_branch
    %16 = sbr.rel (0) target = $region17
  $region16: #{pallas_matmul_affine.1} parent=0 // pred_region
    _
  $region17: #{pallas_matmul_affine.1} parent=0 // pred_fallthru
    _
  %p18 = scmp.eq.s32.totalorder 0, 0
  // Predicated region
  $region18: #{pallas_matmul_affine.1} parent=0 // pred_check
    %p19 = pneg %p18
  $region19: #{pallas_matmul_affine.1} parent=0 // pred_check_branch
    %21 = sbr.rel (%p19) target = $region21
  $region20: #{pallas_matmul_affine.1} parent=0 // pred_region
    %vm22 = vcmask 523264
    %23 = vst.msk [vmem:[#allocation2] sm:$0xff] %vm22, 0.0
    %24 = vst.msk [vmem:[#allocation2 + $0x8] sm:$0xff] %vm22, 0.0
    %25 = vst.msk [vmem:[#allocation2 + $0x10] sm:$0xff] %vm22, 0.0
    %26 = vst.msk [vmem:[#allocation2 + $0x18] sm:$0xff] %vm22, 0.0
    %27 = vst.msk [vmem:[#allocation2 + $0x20] sm:$0xff] %vm22, 0.0
    %28 = vst.msk [vmem:[#allocation2 + $0x28] sm:$0xff] %vm22, 0.0
    %29 = vst.msk [vmem:[#allocation2 + $0x30] sm:$0xff] %vm22, 0.0
    %30 = vst.msk [vmem:[#allocation2 + $0x38] sm:$0xff] %vm22, 0.0
    %31 = vst.msk [vmem:[#allocation2 + $0x40] sm:$0xff] %vm22, 0.0
    %32 = vst.msk [vmem:[#allocation2 + $0x48] sm:$0xff] %vm22, 0.0
    %33 = vst.msk [vmem:[#allocation2 + $0x50] sm:$0xff] %vm22, 0.0
    %34 = vst.msk [vmem:[#allocation2 + $0x58] sm:$0xff] %vm22, 0.0
    %35 = vst.msk [vmem:[#allocation2 + $0x60] sm:$0xff] %vm22, 0.0
    %36 = vst.msk [vmem:[#allocation2 + $0x68] sm:$0xff] %vm22, 0.0
    %37 = vst.msk [vmem:[#allocation2 + $0x70] sm:$0xff] %vm22, 0.0
    %38 = vst.msk [vmem:[#allocation2 + $0x78] sm:$0xff] %vm22, 0.0
    %39 = vst.msk [vmem:[#allocation2 + $0x80] sm:$0xff] %vm22, 0.0
    %40 = vst.msk [vmem:[#allocation2 + $0x88] sm:$0xff] %vm22, 0.0
    %41 = vst.msk [vmem:[#allocation2 + $0x90] sm:$0xff] %vm22, 0.0
    %42 = vst.msk [vmem:[#allocation2 + $0x98] sm:$0xff] %vm22, 0.0
    %43 = vst.msk [vmem:[#allocation2 + $0xa0] sm:$0xff] %vm22, 0.0
    %44 = vst.msk [vmem:[#allocation2 + $0xa8] sm:$0xff] %vm22, 0.0
    %45 = vst.msk [vmem:[#allocation2 + $0xb0] sm:$0xff] %vm22, 0.0
    %46 = vst.msk [vmem:[#allocation2 + $0xb8] sm:$0xff] %vm22, 0.0
    %47 = vst.msk [vmem:[#allocation2 + $0xc0] sm:$0xff] %vm22, 0.0
    %48 = vst.msk [vmem:[#allocation2 + $0xc8] sm:$0xff] %vm22, 0.0
    %49 = vst.msk [vmem:[#allocation2 + $0xd0] sm:$0xff] %vm22, 0.0
    %50 = vst.msk [vmem:[#allocation2 + $0xd8] sm:$0xff] %vm22, 0.0
    %51 = vst.msk [vmem:[#allocation2 + $0xe0] sm:$0xff] %vm22, 0.0
    %52 = vst.msk [vmem:[#allocation2 + $0xe8] sm:$0xff] %vm22, 0.0
    %53 = vst.msk [vmem:[#allocation2 + $0xf0] sm:$0xff] %vm22, 0.0
    %54 = vst.msk [vmem:[#allocation2 + $0xf8] sm:$0xff] %vm22, 0.0
  $region21: #{pallas_matmul_affine.1} parent=0 // pred_fallthru
    _
  %v55 = vld [vmem:[#allocation2] sm:$0xff]
  %v56 = vld [vmem:[#allocation2 + $0x8] sm:$0xff]
  %v57 = vld [vmem:[#allocation2 + $0x10] sm:$0xff]
  %v58 = vld [vmem:[#allocation2 + $0x18] sm:$0xff]
  %v59 = vld [vmem:[#allocation2 + $0x20] sm:$0xff]
  %v60 = vld [vmem:[#allocation2 + $0x28] sm:$0xff]
  %v61 = vld [vmem:[#allocation2 + $0x30] sm:$0xff]
  %v62 = vld [vmem:[#allocation2 + $0x38] sm:$0xff]
  %v63 = vld [vmem:[#allocation2 + $0x40] sm:$0xff]
  %v64 = vld [vmem:[#allocation2 + $0x48] sm:$0xff]
  %v65 = vld [vmem:[#allocation2 + $0x50] sm:$0xff]
  %v66 = vld [vmem:[#allocation2 + $0x58] sm:$0xff]
  %v67 = vld [vmem:[#allocation2 + $0x60] sm:$0xff]
  %v68 = vld [vmem:[#allocation2 + $0x68] sm:$0xff]
  %v69 = vld [vmem:[#allocation2 + $0x70] sm:$0xff]
  %v70 = vld [vmem:[#allocation2 + $0x78] sm:$0xff]
  %v71 = vld [vmem:[#allocation2 + $0x80] sm:$0xff]
  %v72 = vld [vmem:[#allocation2 + $0x88] sm:$0xff]
  %v73 = vld [vmem:[#allocation2 + $0x90] sm:$0xff]
  %v74 = vld [vmem:[#allocation2 + $0x98] sm:$0xff]
  %v75 = vld [vmem:[#allocation2 + $0xa0] sm:$0xff]
  %v76 = vld [vmem:[#allocation2 + $0xa8] sm:$0xff]
  %v77 = vld [vmem:[#allocation2 + $0xb0] sm:$0xff]
  %v78 = vld [vmem:[#allocation2 + $0xb8] sm:$0xff]
  %v79 = vld [vmem:[#allocation2 + $0xc0] sm:$0xff]
  %v80 = vld [vmem:[#allocation2 + $0xc8] sm:$0xff]
  %v81 = vld [vmem:[#allocation2 + $0xd0] sm:$0xff]
  %v82 = vld [vmem:[#allocation2 + $0xd8] sm:$0xff]
  %v83 = vld [vmem:[#allocation2 + $0xe0] sm:$0xff]
  %v84 = vld [vmem:[#allocation2 + $0xe8] sm:$0xff]
  %v85 = vld [vmem:[#allocation2 + $0xf0] sm:$0xff]
  %v86 = vld [vmem:[#allocation2 + $0xf8] sm:$0xff]
  %v87 = vld [vmem:[%s0] sm:$0xff]
  %v88 = vld [vmem:[%s0 + $0x8] sm:$0xff]
  %v89 = vld [vmem:[%s0 + $0x10] sm:$0xff]
  %v90 = vld [vmem:[%s0 + $0x18] sm:$0xff]
  %v91 = vld [vmem:[%s0 + $0x20] sm:$0xff]
  %v92 = vld [vmem:[%s0 + $0x28] sm:$0xff]
  %v93 = vld [vmem:[%s0 + $0x30] sm:$0xff]
  %v94 = vld [vmem:[%s0 + $0x38] sm:$0xff]
  %v95 = vld [vmem:[%s0 + $0x40] sm:$0xff]
  %v96 = vld [vmem:[%s0 + $0x48] sm:$0xff]
  %v97 = vld [vmem:[%s0 + $0x50] sm:$0xff]
  %v98 = vld [vmem:[%s0 + $0x58] sm:$0xff]
  %v99 = vld [vmem:[%s0 + $0x60] sm:$0xff]
  %v100 = vld [vmem:[%s0 + $0x68] sm:$0xff]
  %v101 = vld [vmem:[%s0 + $0x70] sm:$0xff]
  %v102 = vld [vmem:[%s0 + $0x78] sm:$0xff]
  %v103 = vld [vmem:[%s0 + $0x80] sm:$0xff]
  %v104 = vld [vmem:[%s0 + $0x88] sm:$0xff]
  %v105 = vld [vmem:[%s0 + $0x90] sm:$0xff]
  %v106 = vld [vmem:[%s0 + $0x98] sm:$0xff]
  %v107 = vld [vmem:[%s0 + $0xa0] sm:$0xff]
  %v108 = vld [vmem:[%s0 + $0xa8] sm:$0xff]
  %v109 = vld [vmem:[%s0 + $0xb0] sm:$0xff]
  %v110 = vld [vmem:[%s0 + $0xb8] sm:$0xff]
  %v111 = vld [vmem:[%s0 + $0xc0] sm:$0xff]
  %v112 = vld [vmem:[%s0 + $0xc8] sm:$0xff]
  %v113 = vld [vmem:[%s0 + $0xd0] sm:$0xff]
  %v114 = vld [vmem:[%s0 + $0xd8] sm:$0xff]
  %v115 = vld [vmem:[%s0 + $0xe0] sm:$0xff]
  %v116 = vld [vmem:[%s0 + $0xe8] sm:$0xff]
  %v117 = vld [vmem:[%s0 + $0xf0] sm:$0xff]
  %v118 = vld [vmem:[%s0 + $0xf8] sm:$0xff]
  %v119 = vld [vmem:[%s1] sm:$0xf]
  %v120 = vld [vmem:[%s1 + $0x4] sm:$0xf]
  %v121 = vld [vmem:[%s1 + $0x8] sm:$0xf]
  %v122 = vld [vmem:[%s1 + $0xc] sm:$0xf]
  %v123 = vld [vmem:[%s1 + $0x10] sm:$0xf]
  %v124 = vld [vmem:[%s1 + $0x14] sm:$0xf]
  %v125 = vld [vmem:[%s1 + $0x18] sm:$0xf]
  %v126 = vld [vmem:[%s1 + $0x1c] sm:$0xf]
  %v127 = vld [vmem:[%s1 + $0x20] sm:$0xf]
  %v128 = vld [vmem:[%s1 + $0x24] sm:$0xf]
  %v129 = vld [vmem:[%s1 + $0x28] sm:$0xf]
  %v130 = vld [vmem:[%s1 + $0x2c] sm:$0xf]
  %v131 = vld [vmem:[%s1 + $0x30] sm:$0xf]
  %v132 = vld [vmem:[%s1 + $0x34] sm:$0xf]
  %v133 = vld [vmem:[%s1 + $0x38] sm:$0xf]
  %v134 = vld [vmem:[%s1 + $0x3c] sm:$0xf]
  %v135 = vld [vmem:[%s1 + $0x40] sm:$0xf]
  %v136 = vld [vmem:[%s1 + $0x44] sm:$0xf]
  %v137 = vld [vmem:[%s1 + $0x48] sm:$0xf]
  %v138 = vld [vmem:[%s1 + $0x4c] sm:$0xf]
  %v139 = vld [vmem:[%s1 + $0x50] sm:$0xf]
  %v140 = vld [vmem:[%s1 + $0x54] sm:$0xf]
  %v141 = vld [vmem:[%s1 + $0x58] sm:$0xf]
  %v142 = vld [vmem:[%s1 + $0x5c] sm:$0xf]
  %v143 = vld [vmem:[%s1 + $0x60] sm:$0xf]
  %v144 = vld [vmem:[%s1 + $0x64] sm:$0xf]
  %v145 = vld [vmem:[%s1 + $0x68] sm:$0xf]
  %v146 = vld [vmem:[%s1 + $0x6c] sm:$0xf]
  %v147 = vld [vmem:[%s1 + $0x70] sm:$0xf]
  %v148 = vld [vmem:[%s1 + $0x74] sm:$0xf]
  %v149 = vld [vmem:[%s1 + $0x78] sm:$0xf]
  %v150 = vld [vmem:[%s1 + $0x7c] sm:$0xf]
  %v183 = vunpack.c.l.b16 %v87
  %v184 = vunpack.c.h.b16 %v87
  %v185 = vunpack.c.l.b16 %v88
  %v186 = vunpack.c.h.b16 %v88
  %v187 = vunpack.c.l.b16 %v89
  %v188 = vunpack.c.h.b16 %v89
  %v189 = vunpack.c.l.b16 %v90
  %v190 = vunpack.c.h.b16 %v90
  %v191 = vunpack.c.l.b16 %v91
  %v192 = vunpack.c.h.b16 %v91
  %v193 = vunpack.c.l.b16 %v92
  %v194 = vunpack.c.h.b16 %v92
  %v195 = vunpack.c.l.b16 %v93
  %v196 = vunpack.c.h.b16 %v93
  %v197 = vunpack.c.l.b16 %v94
  %v198 = vunpack.c.h.b16 %v94
  %v199 = vunpack.c.l.b16 %v95
  %v200 = vunpack.c.h.b16 %v95
  %v201 = vunpack.c.l.b16 %v96
  %v202 = vunpack.c.h.b16 %v96
  %v203 = vunpack.c.l.b16 %v97
  %v204 = vunpack.c.h.b16 %v97
  %v205 = vunpack.c.l.b16 %v98
  %v206 = vunpack.c.h.b16 %v98
  %v207 = vunpack.c.l.b16 %v99
  %v208 = vunpack.c.h.b16 %v99
  %v209 = vunpack.c.l.b16 %v100
  %v210 = vunpack.c.h.b16 %v100
  %v211 = vunpack.c.l.b16 %v101
  %v212 = vunpack.c.h.b16 %v101
  %v213 = vunpack.c.l.b16 %v102
  %v214 = vunpack.c.h.b16 %v102
  %v215 = vunpack.c.l.b16 %v103
  %v216 = vunpack.c.h.b16 %v103
  %v217 = vunpack.c.l.b16 %v104
  %v218 = vunpack.c.h.b16 %v104
  %v219 = vunpack.c.l.b16 %v105
  %v220 = vunpack.c.h.b16 %v105
  %v221 = vunpack.c.l.b16 %v106
  %v222 = vunpack.c.h.b16 %v106
  %v223 = vunpack.c.l.b16 %v107
  %v224 = vunpack.c.h.b16 %v107
  %v225 = vunpack.c.l.b16 %v108
  %v226 = vunpack.c.h.b16 %v108
  %v227 = vunpack.c.l.b16 %v109
  %v228 = vunpack.c.h.b16 %v109
  %v229 = vunpack.c.l.b16 %v110
  %v230 = vunpack.c.h.b16 %v110
  %v231 = vunpack.c.l.b16 %v111
  %v232 = vunpack.c.h.b16 %v111
  %v233 = vunpack.c.l.b16 %v112
  %v234 = vunpack.c.h.b16 %v112
  %v235 = vunpack.c.l.b16 %v113
  %v236 = vunpack.c.h.b16 %v113
  %v237 = vunpack.c.l.b16 %v114
  %v238 = vunpack.c.h.b16 %v114
  %v239 = vunpack.c.l.b16 %v115
  %v240 = vunpack.c.h.b16 %v115
  %v241 = vunpack.c.l.b16 %v116
  %v242 = vunpack.c.h.b16 %v116
  %v243 = vunpack.c.l.b16 %v117
  %v244 = vunpack.c.h.b16 %v117
  %v245 = vunpack.c.l.b16 %v118
  %v246 = vunpack.c.h.b16 %v118
  %v247 = vpack.c.b16 %v185, %v183
  %v248 = vpack.c.b16 %v186, %v184
  %v249 = vpack.c.b16 %v189, %v187
  %v250 = vpack.c.b16 %v190, %v188
  %v251 = vpack.c.b16 %v193, %v191
  %v252 = vpack.c.b16 %v194, %v192
  %v253 = vpack.c.b16 %v197, %v195
  %v254 = vpack.c.b16 %v198, %v196
  %v255 = vpack.c.b16 %v201, %v199
  %v256 = vpack.c.b16 %v202, %v200
  %v257 = vpack.c.b16 %v205, %v203
  %v258 = vpack.c.b16 %v206, %v204
  %v259 = vpack.c.b16 %v209, %v207
  %v260 = vpack.c.b16 %v210, %v208
  %v261 = vpack.c.b16 %v213, %v211
  %v262 = vpack.c.b16 %v214, %v212
  %v263 = vpack.c.b16 %v217, %v215
  %v264 = vpack.c.b16 %v218, %v216
  %v265 = vpack.c.b16 %v221, %v219
  %v266 = vpack.c.b16 %v222, %v220
  %v267 = vpack.c.b16 %v225, %v223
  %v268 = vpack.c.b16 %v226, %v224
  %v269 = vpack.c.b16 %v229, %v227
  %v270 = vpack.c.b16 %v230, %v228
  %v271 = vpack.c.b16 %v233, %v231
  %v272 = vpack.c.b16 %v234, %v232
  %v273 = vpack.c.b16 %v237, %v235
  %v274 = vpack.c.b16 %v238, %v236
  %v275 = vpack.c.b16 %v241, %v239
  %v276 = vpack.c.b16 %v242, %v240
  %v277 = vpack.c.b16 %v245, %v243
  %v278 = vpack.c.b16 %v246, %v244
  %v343 = vunpack.c.l.b16 %v119
  %v344 = vunpack.c.l.b16 %v120
  %v345 = vunpack.c.l.b16 %v121
  %v346 = vunpack.c.l.b16 %v122
  %v347 = vunpack.c.l.b16 %v123
  %v348 = vunpack.c.l.b16 %v124
  %v349 = vunpack.c.l.b16 %v125
  %v350 = vunpack.c.l.b16 %v126
  %v351 = vunpack.c.l.b16 %v127
  %v352 = vunpack.c.l.b16 %v128
  %v353 = vunpack.c.l.b16 %v129
  %v354 = vunpack.c.l.b16 %v130
  %v355 = vunpack.c.l.b16 %v131
  %v356 = vunpack.c.l.b16 %v132
  %v357 = vunpack.c.l.b16 %v133
  %v358 = vunpack.c.l.b16 %v134
  %v359 = vunpack.c.l.b16 %v135
  %v360 = vunpack.c.l.b16 %v136
  %v361 = vunpack.c.l.b16 %v137
  %v362 = vunpack.c.l.b16 %v138
  %v363 = vunpack.c.l.b16 %v139
  %v364 = vunpack.c.l.b16 %v140
  %v365 = vunpack.c.l.b16 %v141
  %v366 = vunpack.c.l.b16 %v142
  %v367 = vunpack.c.l.b16 %v143
  %v368 = vunpack.c.l.b16 %v144
  %v369 = vunpack.c.l.b16 %v145
  %v370 = vunpack.c.l.b16 %v146
  %v371 = vunpack.c.l.b16 %v147
  %v372 = vunpack.c.l.b16 %v148
  %v373 = vunpack.c.l.b16 %v149
  %v374 = vunpack.c.l.b16 %v150
  %v375 = vpack.c.b16 %v344, %v343
  %v376 = vpack.c.b16 %v346, %v345
  %v377 = vpack.c.b16 %v348, %v347
  %v378 = vpack.c.b16 %v350, %v349
  %v379 = vpack.c.b16 %v352, %v351
  %v380 = vpack.c.b16 %v354, %v353
  %v381 = vpack.c.b16 %v356, %v355
  %v382 = vpack.c.b16 %v358, %v357
  %v383 = vpack.c.b16 %v360, %v359
  %v384 = vpack.c.b16 %v362, %v361
  %v385 = vpack.c.b16 %v364, %v363
  %v386 = vpack.c.b16 %v366, %v365
  %v387 = vpack.c.b16 %v368, %v367
  %v388 = vpack.c.b16 %v370, %v369
  %v389 = vpack.c.b16 %v372, %v371
  %v390 = vpack.c.b16 %v374, %v373
  %407 = vmatprep.subr.bf16.mxu0 0
  %408 = vmatpush1.bf16.msra.mxu0 %v375
  %409 = vmatprep.subr.bf16.mxu0 0
  %410 = vmatpush1.bf16.msra.mxu0 %v376
  %411 = vmatprep.subr.bf16.mxu0 0
  %412 = vmatpush1.bf16.msra.mxu0 %v377
  %413 = vmatprep.subr.bf16.mxu0 0
  %414 = vmatpush1.bf16.msra.mxu0 %v378
  %415 = vmatprep.subr.bf16.mxu0 0
  %416 = vmatpush1.bf16.msra.mxu0 %v379
  %417 = vmatprep.subr.bf16.mxu0 0
  %418 = vmatpush1.bf16.msra.mxu0 %v380
  %419 = vmatprep.subr.bf16.mxu0 0
  %420 = vmatpush1.bf16.msra.mxu0 %v381
  %421 = vmatprep.subr.bf16.mxu0 0
  %422 = vmatpush1.bf16.msra.mxu0 %v382
  %423 = vmatprep.subr.bf16.mxu0 0
  %424 = vmatpush1.bf16.msra.mxu0 %v383
  %425 = vmatprep.subr.bf16.mxu0 0
  %426 = vmatpush1.bf16.msra.mxu0 %v384
  %427 = vmatprep.subr.bf16.mxu0 0
  %428 = vmatpush1.bf16.msra.mxu0 %v385
  %429 = vmatprep.subr.bf16.mxu0 0
  %430 = vmatpush1.bf16.msra.mxu0 %v386
  %431 = vmatprep.subr.bf16.mxu0 0
  %432 = vmatpush1.bf16.msra.mxu0 %v387
  %433 = vmatprep.subr.bf16.mxu0 0
  %434 = vmatpush1.bf16.msra.mxu0 %v388
  %435 = vmatprep.subr.bf16.mxu0 0
  %436 = vmatpush1.bf16.msra.mxu0 %v389
  %437 = vmatprep.subr.bf16.mxu0 0
  %438 = vmatpush1.bf16.msra.mxu0 %v390
  %439 = vmatprep.mubr.bf16.mxu0 %v248
  %440 = vmatmul.mubr.bf16.gmra.mrb[0].mxu0 %v247
  %v441 = vpop.f32.mrb[0].mxu0
  %v442 = vadd.f32 0.0, %v441
  %v443 = vpop.f32.mrb[0].mxu0
  %v444 = vpop.f32.mrb[0].mxu0
  %v445 = vadd.f32 0.0, %v444
  %v446 = vpop.f32.mrb[0].mxu0
  %447 = vmatprep.mubr.bf16.mxu0 %v250
  %448 = vmatmul.mubr.bf16.gmra.mrb[0].mxu0 %v249
  %v449 = vpop.f32.mrb[0].mxu0
  %v450 = vadd.f32 0.0, %v449
  %v451 = vpop.f32.mrb[0].mxu0
  %v452 = vpop.f32.mrb[0].mxu0
  %v453 = vadd.f32 0.0, %v452
  %v454 = vpop.f32.mrb[0].mxu0
  %455 = vmatprep.mubr.bf16.mxu0 %v252
  %456 = vmatmul.mubr.bf16.gmra.mrb[0].mxu0 %v251
  %v457 = vpop.f32.mrb[0].mxu0
  %v458 = vadd.f32 0.0, %v457
  %v459 = vpop.f32.mrb[0].mxu0
  %v460 = vpop.f32.mrb[0].mxu0
  %v461 = vadd.f32 0.0, %v460
  %v462 = vpop.f32.mrb[0].mxu0
  %463 = vmatprep.mubr.bf16.mxu0 %v254
  %464 = vmatmul.mubr.bf16.gmra.mrb[0].mxu0 %v253
  %v465 = vpop.f32.mrb[0].mxu0
  %v466 = vadd.f32 0.0, %v465
  %v467 = vpop.f32.mrb[0].mxu0
  %v468 = vpop.f32.mrb[0].mxu0
  %v469 = vadd.f32 0.0, %v468
  %v470 = vpop.f32.mrb[0].mxu0
  %471 = vmatprep.mubr.bf16.mxu0 %v256
  %472 = vmatmul.mubr.bf16.gmra.mrb[0].mxu0 %v255
  %v473 = vpop.f32.mrb[0].mxu0
  %v474 = vadd.f32 0.0, %v473
  %v475 = vpop.f32.mrb[0].mxu0
  %v476 = vpop.f32.mrb[0].mxu0
  %v477 = vadd.f32 0.0, %v476
  %v478 = vpop.f32.mrb[0].mxu0
  %479 = vmatprep.mubr.bf16.mxu0 %v258
  %480 = vmatmul.mubr.bf16.gmra.mrb[0].mxu0 %v257
  %v481 = vpop.f32.mrb[0].mxu0
  %v482 = vadd.f32 0.0, %v481
  %v483 = vpop.f32.mrb[0].mxu0
  %v484 = vpop.f32.mrb[0].mxu0
  %v485 = vadd.f32 0.0, %v484
  %v486 = vpop.f32.mrb[0].mxu0
  %487 = vmatprep.mubr.bf16.mxu0 %v260
  %488 = vmatmul.mubr.bf16.gmra.mrb[0].mxu0 %v259
  %v489 = vpop.f32.mrb[0].mxu0
  %v490 = vadd.f32 0.0, %v489
  %v491 = vpop.f32.mrb[0].mxu0
  %v492 = vpop.f32.mrb[0].mxu0
  %v493 = vadd.f32 0.0, %v492
  %v494 = vpop.f32.mrb[0].mxu0
  %495 = vmatprep.mubr.bf16.mxu0 %v262
  %496 = vmatmul.mubr.bf16.gmra.mrb[0].mxu0 %v261
  %v497 = vpop.f32.mrb[0].mxu0
  %v498 = vadd.f32 0.0, %v497
  %v499 = vpop.f32.mrb[0].mxu0
  %v500 = vpop.f32.mrb[0].mxu0
  %v501 = vadd.f32 0.0, %v500
  %v502 = vpop.f32.mrb[0].mxu0
  %503 = vmatprep.mubr.bf16.mxu0 %v264
  %504 = vmatmul.mubr.bf16.gmra.mrb[0].mxu0 %v263
  %v505 = vpop.f32.mrb[0].mxu0
  %v506 = vadd.f32 0.0, %v505
  %v507 = vpop.f32.mrb[0].mxu0
  %v508 = vpop.f32.mrb[0].mxu0
  %v509 = vadd.f32 0.0, %v508
  %v510 = vpop.f32.mrb[0].mxu0
  %511 = vmatprep.mubr.bf16.mxu0 %v266
  %512 = vmatmul.mubr.bf16.gmra.mrb[0].mxu0 %v265
  %v513 = vpop.f32.mrb[0].mxu0
  %v514 = vadd.f32 0.0, %v513
  %v515 = vpop.f32.mrb[0].mxu0
  %v516 = vpop.f32.mrb[0].mxu0
  %v517 = vadd.f32 0.0, %v516
  %v518 = vpop.f32.mrb[0].mxu0
  %519 = vmatprep.mubr.bf16.mxu0 %v268
  %520 = vmatmul.mubr.bf16.gmra.mrb[0].mxu0 %v267
  %v521 = vpop.f32.mrb[0].mxu0
  %v522 = vadd.f32 0.0, %v521
  %v523 = vpop.f32.mrb[0].mxu0
  %v524 = vpop.f32.mrb[0].mxu0
  %v525 = vadd.f32 0.0, %v524
  %v526 = vpop.f32.mrb[0].mxu0
  %527 = vmatprep.mubr.bf16.mxu0 %v270
  %528 = vmatmul.mubr.bf16.gmra.mrb[0].mxu0 %v269
  %v529 = vpop.f32.mrb[0].mxu0
  %v530 = vadd.f32 0.0, %v529
  %v531 = vpop.f32.mrb[0].mxu0
  %v532 = vpop.f32.mrb[0].mxu0
  %v533 = vadd.f32 0.0, %v532
  %v534 = vpop.f32.mrb[0].mxu0
  %535 = vmatprep.mubr.bf16.mxu0 %v272
  %536 = vmatmul.mubr.bf16.gmra.mrb[0].mxu0 %v271
  %v537 = vpop.f32.mrb[0].mxu0
  %v538 = vadd.f32 0.0, %v537
  %v539 = vpop.f32.mrb[0].mxu0
  %v540 = vpop.f32.mrb[0].mxu0
  %v541 = vadd.f32 0.0, %v540
  %v542 = vpop.f32.mrb[0].mxu0
  %543 = vmatprep.mubr.bf16.mxu0 %v274
  %544 = vmatmul.mubr.bf16.gmra.mrb[0].mxu0 %v273
  %v545 = vpop.f32.mrb[0].mxu0
  %v546 = vadd.f32 0.0, %v545
  %v547 = vpop.f32.mrb[0].mxu0
  %v548 = vpop.f32.mrb[0].mxu0
  %v549 = vadd.f32 0.0, %v548
  %v550 = vpop.f32.mrb[0].mxu0
  %551 = vmatprep.mubr.bf16.mxu0 %v276
  %552 = vmatmul.mubr.bf16.gmra.mrb[0].mxu0 %v275
  %v553 = vpop.f32.mrb[0].mxu0
  %v554 = vadd.f32 0.0, %v553
  %v555 = vpop.f32.mrb[0].mxu0
  %v556 = vpop.f32.mrb[0].mxu0
  %v557 = vadd.f32 0.0, %v556
  %v558 = vpop.f32.mrb[0].mxu0
  %559 = vmatprep.mubr.bf16.mxu0 %v278
  %560 = vmatmul.mubr.bf16.gmra.mrb[0].mxu0 %v277
  %v561 = vpop.f32.mrb[0].mxu0
  %v562 = vadd.f32 0.0, %v561
  %v563 = vpop.f32.mrb[0].mxu0
  %v564 = vpop.f32.mrb[0].mxu0
  %v565 = vadd.f32 0.0, %v564
  %v566 = vpop.f32.mrb[0].mxu0
  %567 = vdwg.mxu0
  %v568 = vadd.f32 %v55, %v442
  %v569 = vadd.f32 %v56, %v445
  %v570 = vadd.f32 %v57, %v450
  %v571 = vadd.f32 %v58, %v453
  %v572 = vadd.f32 %v59, %v458
  %v573 = vadd.f32 %v60, %v461
  %v574 = vadd.f32 %v61, %v466
  %v575 = vadd.f32 %v62, %v469
  %v576 = vadd.f32 %v63, %v474
  %v577 = vadd.f32 %v64, %v477
  %v578 = vadd.f32 %v65, %v482
  %v579 = vadd.f32 %v66, %v485
  %v580 = vadd.f32 %v67, %v490
  %v581 = vadd.f32 %v68, %v493
  %v582 = vadd.f32 %v69, %v498
  %v583 = vadd.f32 %v70, %v501
  %v584 = vadd.f32 %v71, %v506
  %v585 = vadd.f32 %v72, %v509
  %v586 = vadd.f32 %v73, %v514
  %v587 = vadd.f32 %v74, %v517
  %v588 = vadd.f32 %v75, %v522
  %v589 = vadd.f32 %v76, %v525
  %v590 = vadd.f32 %v77, %v530
  %v591 = vadd.f32 %v78, %v533
  %v592 = vadd.f32 %v79, %v538
  %v593 = vadd.f32 %v80, %v541
  %v594 = vadd.f32 %v81, %v546
  %v595 = vadd.f32 %v82, %v549
  %v596 = vadd.f32 %v83, %v554
  %v597 = vadd.f32 %v84, %v557
  %v598 = vadd.f32 %v85, %v562
  %v599 = vadd.f32 %v86, %v565
  %vm600 = vcmask 523264
  %601 = vst.msk [vmem:[#allocation2] sm:$0xff] %vm600, %v568
  %602 = vst.msk [vmem:[#allocation2 + $0x8] sm:$0xff] %vm600, %v569
  %603 = vst.msk [vmem:[#allocation2 + $0x10] sm:$0xff] %vm600, %v570
  %604 = vst.msk [vmem:[#allocation2 + $0x18] sm:$0xff] %vm600, %v571
  %605 = vst.msk [vmem:[#allocation2 + $0x20] sm:$0xff] %vm600, %v572
  %606 = vst.msk [vmem:[#allocation2 + $0x28] sm:$0xff] %vm600, %v573
  %607 = vst.msk [vmem:[#allocation2 + $0x30] sm:$0xff] %vm600, %v574
  %608 = vst.msk [vmem:[#allocation2 + $0x38] sm:$0xff] %vm600, %v575
  %609 = vst.msk [vmem:[#allocation2 + $0x40] sm:$0xff] %vm600, %v576
  %610 = vst.msk [vmem:[#allocation2 + $0x48] sm:$0xff] %vm600, %v577
  %611 = vst.msk [vmem:[#allocation2 + $0x50] sm:$0xff] %vm600, %v578
  %612 = vst.msk [vmem:[#allocation2 + $0x58] sm:$0xff] %vm600, %v579
  %613 = vst.msk [vmem:[#allocation2 + $0x60] sm:$0xff] %vm600, %v580
  %614 = vst.msk [vmem:[#allocation2 + $0x68] sm:$0xff] %vm600, %v581
  %615 = vst.msk [vmem:[#allocation2 + $0x70] sm:$0xff] %vm600, %v582
  %616 = vst.msk [vmem:[#allocation2 + $0x78] sm:$0xff] %vm600, %v583
  %617 = vst.msk [vmem:[#allocation2 + $0x80] sm:$0xff] %vm600, %v584
  %618 = vst.msk [vmem:[#allocation2 + $0x88] sm:$0xff] %vm600, %v585
  %619 = vst.msk [vmem:[#allocation2 + $0x90] sm:$0xff] %vm600, %v586
  %620 = vst.msk [vmem:[#allocation2 + $0x98] sm:$0xff] %vm600, %v587
  %621 = vst.msk [vmem:[#allocation2 + $0xa0] sm:$0xff] %vm600, %v588
  %622 = vst.msk [vmem:[#allocation2 + $0xa8] sm:$0xff] %vm600, %v589
  %623 = vst.msk [vmem:[#allocation2 + $0xb0] sm:$0xff] %vm600, %v590
  %624 = vst.msk [vmem:[#allocation2 + $0xb8] sm:$0xff] %vm600, %v591
  %625 = vst.msk [vmem:[#allocation2 + $0xc0] sm:$0xff] %vm600, %v592
  %626 = vst.msk [vmem:[#allocation2 + $0xc8] sm:$0xff] %vm600, %v593
  %627 = vst.msk [vmem:[#allocation2 + $0xd0] sm:$0xff] %vm600, %v594
  %628 = vst.msk [vmem:[#allocation2 + $0xd8] sm:$0xff] %vm600, %v595
  %629 = vst.msk [vmem:[#allocation2 + $0xe0] sm:$0xff] %vm600, %v596
  %630 = vst.msk [vmem:[#allocation2 + $0xe8] sm:$0xff] %vm600, %v597
  %631 = vst.msk [vmem:[#allocation2 + $0xf0] sm:$0xff] %vm600, %v598
  %632 = vst.msk [vmem:[#allocation2 + $0xf8] sm:$0xff] %vm600, %v599
  // Predicated region
  $region22: #{pallas_matmul_affine.1} parent=0 // pred_check
    %p633 = pneg %p18
  $region23: #{pallas_matmul_affine.1} parent=0 // pred_check_branch
    %635 = sbr.rel (%p633) target = $region25
  $region24: #{pallas_matmul_affine.1} parent=0 // pred_region
    %v636 = vld [vmem:[#allocation2] sm:$0xff]
    %v637 = vld [vmem:[#allocation2 + $0x8] sm:$0xff]
    %v638 = vld [vmem:[#allocation2 + $0x10] sm:$0xff]
    %v639 = vld [vmem:[#allocation2 + $0x18] sm:$0xff]
    %v640 = vld [vmem:[#allocation2 + $0x20] sm:$0xff]
    %v641 = vld [vmem:[#allocation2 + $0x28] sm:$0xff]
    %v642 = vld [vmem:[#allocation2 + $0x30] sm:$0xff]
    %v643 = vld [vmem:[#allocation2 + $0x38] sm:$0xff]
    %v644 = vld [vmem:[#allocation2 + $0x40] sm:$0xff]
    %v645 = vld [vmem:[#allocation2 + $0x48] sm:$0xff]
    %v646 = vld [vmem:[#allocation2 + $0x50] sm:$0xff]
    %v647 = vld [vmem:[#allocation2 + $0x58] sm:$0xff]
    %v648 = vld [vmem:[#allocation2 + $0x60] sm:$0xff]
    %v649 = vld [vmem:[#allocation2 + $0x68] sm:$0xff]
    %v650 = vld [vmem:[#allocation2 + $0x70] sm:$0xff]
    %v651 = vld [vmem:[#allocation2 + $0x78] sm:$0xff]
    %v652 = vld [vmem:[#allocation2 + $0x80] sm:$0xff]
    %v653 = vld [vmem:[#allocation2 + $0x88] sm:$0xff]
    %v654 = vld [vmem:[#allocation2 + $0x90] sm:$0xff]
    %v655 = vld [vmem:[#allocation2 + $0x98] sm:$0xff]
    %v656 = vld [vmem:[#allocation2 + $0xa0] sm:$0xff]
    %v657 = vld [vmem:[#allocation2 + $0xa8] sm:$0xff]
    %v658 = vld [vmem:[#allocation2 + $0xb0] sm:$0xff]
    %v659 = vld [vmem:[#allocation2 + $0xb8] sm:$0xff]
    %v660 = vld [vmem:[#allocation2 + $0xc0] sm:$0xff]
    %v661 = vld [vmem:[#allocation2 + $0xc8] sm:$0xff]
    %v662 = vld [vmem:[#allocation2 + $0xd0] sm:$0xff]
    %v663 = vld [vmem:[#allocation2 + $0xd8] sm:$0xff]
    %v664 = vld [vmem:[#allocation2 + $0xe0] sm:$0xff]
    %v665 = vld [vmem:[#allocation2 + $0xe8] sm:$0xff]
    %v666 = vld [vmem:[#allocation2 + $0xf0] sm:$0xff]
    %v667 = vld [vmem:[#allocation2 + $0xf8] sm:$0xff]
    %v668 = vld [vmem:[%s2] sm:$0x1]
    %v670 = vlaneseq
    %v671 = vshrl.u32 %v670, 7
    %v672 = vsub.s32 0, %v671
    %v673 = vrot.slane %v668, %v672
    %v675 = vmul.f32 %v636, %v673
    %v676 = vmul.f32 %v637, %v673
    %v677 = vmul.f32 %v638, %v673
    %v678 = vmul.f32 %v639, %v673
    %v679 = vmul.f32 %v640, %v673
    %v680 = vmul.f32 %v641, %v673
    %v681 = vmul.f32 %v642, %v673
    %v682 = vmul.f32 %v643, %v673
    %v683 = vmul.f32 %v644, %v673
    %v684 = vmul.f32 %v645, %v673
    %v685 = vmul.f32 %v646, %v673
    %v686 = vmul.f32 %v647, %v673
    %v687 = vmul.f32 %v648, %v673
    %v688 = vmul.f32 %v649, %v673
    %v689 = vmul.f32 %v650, %v673
    %v690 = vmul.f32 %v651, %v673
    %v691 = vmul.f32 %v652, %v673
    %v692 = vmul.f32 %v653, %v673
    %v693 = vmul.f32 %v654, %v673
    %v694 = vmul.f32 %v655, %v673
    %v695 = vmul.f32 %v656, %v673
    %v696 = vmul.f32 %v657, %v673
    %v697 = vmul.f32 %v658, %v673
    %v698 = vmul.f32 %v659, %v673
    %v699 = vmul.f32 %v660, %v673
    %v700 = vmul.f32 %v661, %v673
    %v701 = vmul.f32 %v662, %v673
    %v702 = vmul.f32 %v663, %v673
    %v703 = vmul.f32 %v664, %v673
    %v704 = vmul.f32 %v665, %v673
    %v705 = vmul.f32 %v666, %v673
    %v706 = vmul.f32 %v667, %v673
    %v707 = vld [vmem:[%s3] sm:$0x1]
    %v709 = vlaneseq
    %v710 = vshrl.u32 %v709, 7
    %v711 = vsub.s32 0, %v710
    %v712 = vrot.slane %v707, %v711
    %v714 = vadd.f32 %v675, %v712
    %v715 = vadd.f32 %v676, %v712
    %v716 = vadd.f32 %v677, %v712
    %v717 = vadd.f32 %v678, %v712
    %v718 = vadd.f32 %v679, %v712
    %v719 = vadd.f32 %v680, %v712
    %v720 = vadd.f32 %v681, %v712
    %v721 = vadd.f32 %v682, %v712
    %v722 = vadd.f32 %v683, %v712
    %v723 = vadd.f32 %v684, %v712
    %v724 = vadd.f32 %v685, %v712
    %v725 = vadd.f32 %v686, %v712
    %v726 = vadd.f32 %v687, %v712
    %v727 = vadd.f32 %v688, %v712
    %v728 = vadd.f32 %v689, %v712
    %v729 = vadd.f32 %v690, %v712
    %v730 = vadd.f32 %v691, %v712
    %v731 = vadd.f32 %v692, %v712
    %v732 = vadd.f32 %v693, %v712
    %v733 = vadd.f32 %v694, %v712
    %v734 = vadd.f32 %v695, %v712
    %v735 = vadd.f32 %v696, %v712
    %v736 = vadd.f32 %v697, %v712
    %v737 = vadd.f32 %v698, %v712
    %v738 = vadd.f32 %v699, %v712
    %v739 = vadd.f32 %v700, %v712
    %v740 = vadd.f32 %v701, %v712
    %v741 = vadd.f32 %v702, %v712
    %v742 = vadd.f32 %v703, %v712
    %v743 = vadd.f32 %v704, %v712
    %v744 = vadd.f32 %v705, %v712
    %v745 = vadd.f32 %v706, %v712
    %v746 = vmax.f32 %v714, 0.0
    %v747 = vmax.f32 %v715, 0.0
    %v748 = vmax.f32 %v716, 0.0
    %v749 = vmax.f32 %v717, 0.0
    %v750 = vmax.f32 %v718, 0.0
    %v751 = vmax.f32 %v719, 0.0
    %v752 = vmax.f32 %v720, 0.0
    %v753 = vmax.f32 %v721, 0.0
    %v754 = vmax.f32 %v722, 0.0
    %v755 = vmax.f32 %v723, 0.0
    %v756 = vmax.f32 %v724, 0.0
    %v757 = vmax.f32 %v725, 0.0
    %v758 = vmax.f32 %v726, 0.0
    %v759 = vmax.f32 %v727, 0.0
    %v760 = vmax.f32 %v728, 0.0
    %v761 = vmax.f32 %v729, 0.0
    %v762 = vmax.f32 %v730, 0.0
    %v763 = vmax.f32 %v731, 0.0
    %v764 = vmax.f32 %v732, 0.0
    %v765 = vmax.f32 %v733, 0.0
    %v766 = vmax.f32 %v734, 0.0
    %v767 = vmax.f32 %v735, 0.0
    %v768 = vmax.f32 %v736, 0.0
    %v769 = vmax.f32 %v737, 0.0
    %v770 = vmax.f32 %v738, 0.0
    %v771 = vmax.f32 %v739, 0.0
    %v772 = vmax.f32 %v740, 0.0
    %v773 = vmax.f32 %v741, 0.0
    %v774 = vmax.f32 %v742, 0.0
    %v775 = vmax.f32 %v743, 0.0
    %v776 = vmax.f32 %v744, 0.0
    %v777 = vmax.f32 %v745, 0.0
    %v778 = vpack.c.bf16 %v747, %v746
    %v779 = vpack.c.bf16 %v749, %v748
    %v780 = vpack.c.bf16 %v751, %v750
    %v781 = vpack.c.bf16 %v753, %v752
    %v782 = vpack.c.bf16 %v755, %v754
    %v783 = vpack.c.bf16 %v757, %v756
    %v784 = vpack.c.bf16 %v759, %v758
    %v785 = vpack.c.bf16 %v761, %v760
    %v786 = vpack.c.bf16 %v763, %v762
    %v787 = vpack.c.bf16 %v765, %v764
    %v788 = vpack.c.bf16 %v767, %v766
    %v789 = vpack.c.bf16 %v769, %v768
    %v790 = vpack.c.bf16 %v771, %v770
    %v791 = vpack.c.bf16 %v773, %v772
    %v792 = vpack.c.bf16 %v775, %v774
    %v793 = vpack.c.bf16 %v777, %v776
    %v810 = vunpack.c.l.b16 %v778
    %v811 = vunpack.c.h.b16 %v778
    %v812 = vunpack.c.l.b16 %v779
    %v813 = vunpack.c.h.b16 %v779
    %v814 = vunpack.c.l.b16 %v780
    %v815 = vunpack.c.h.b16 %v780
    %v816 = vunpack.c.l.b16 %v781
    %v817 = vunpack.c.h.b16 %v781
    %v818 = vunpack.c.l.b16 %v782
    %v819 = vunpack.c.h.b16 %v782
    %v820 = vunpack.c.l.b16 %v783
    %v821 = vunpack.c.h.b16 %v783
    %v822 = vunpack.c.l.b16 %v784
    %v823 = vunpack.c.h.b16 %v784
    %v824 = vunpack.c.l.b16 %v785
    %v825 = vunpack.c.h.b16 %v785
    %v826 = vunpack.c.l.b16 %v786
    %v827 = vunpack.c.h.b16 %v786
    %v828 = vunpack.c.l.b16 %v787
    %v829 = vunpack.c.h.b16 %v787
    %v830 = vunpack.c.l.b16 %v788
    %v831 = vunpack.c.h.b16 %v788
    %v832 = vunpack.c.l.b16 %v789
    %v833 = vunpack.c.h.b16 %v789
    %v834 = vunpack.c.l.b16 %v790
    %v835 = vunpack.c.h.b16 %v790
    %v836 = vunpack.c.l.b16 %v791
    %v837 = vunpack.c.h.b16 %v791
    %v838 = vunpack.c.l.b16 %v792
    %v839 = vunpack.c.h.b16 %v792
    %v840 = vunpack.c.l.b16 %v793
    %v841 = vunpack.c.h.b16 %v793
    %v842 = vpack.c.b16 %v810, %v810
    %v843 = vpack.c.b16 %v811, %v811
    %v844 = vpack.c.b16 %v812, %v812
    %v845 = vpack.c.b16 %v813, %v813
    %v846 = vpack.c.b16 %v814, %v814
    %v847 = vpack.c.b16 %v815, %v815
    %v848 = vpack.c.b16 %v816, %v816
    %v849 = vpack.c.b16 %v817, %v817
    %v850 = vpack.c.b16 %v818, %v818
    %v851 = vpack.c.b16 %v819, %v819
    %v852 = vpack.c.b16 %v820, %v820
    %v853 = vpack.c.b16 %v821, %v821
    %v854 = vpack.c.b16 %v822, %v822
    %v855 = vpack.c.b16 %v823, %v823
    %v856 = vpack.c.b16 %v824, %v824
    %v857 = vpack.c.b16 %v825, %v825
    %v858 = vpack.c.b16 %v826, %v826
    %v859 = vpack.c.b16 %v827, %v827
    %v860 = vpack.c.b16 %v828, %v828
    %v861 = vpack.c.b16 %v829, %v829
    %v862 = vpack.c.b16 %v830, %v830
    %v863 = vpack.c.b16 %v831, %v831
    %v864 = vpack.c.b16 %v832, %v832
    %v865 = vpack.c.b16 %v833, %v833
    %v866 = vpack.c.b16 %v834, %v834
    %v867 = vpack.c.b16 %v835, %v835
    %v868 = vpack.c.b16 %v836, %v836
    %v869 = vpack.c.b16 %v837, %v837
    %v870 = vpack.c.b16 %v838, %v838
    %v871 = vpack.c.b16 %v839, %v839
    %v872 = vpack.c.b16 %v840, %v840
    %v873 = vpack.c.b16 %v841, %v841
    %vm906 = vcmask 519168
    %907 = vst.msk [vmem:[%s4] sm:$0xf] %vm906, %v842
    %908 = vst.msk [vmem:[%s4 + $0x4] sm:$0xf] %vm906, %v843
    %909 = vst.msk [vmem:[%s4 + $0x8] sm:$0xf] %vm906, %v844
    %910 = vst.msk [vmem:[%s4 + $0xc] sm:$0xf] %vm906, %v845
    %911 = vst.msk [vmem:[%s4 + $0x10] sm:$0xf] %vm906, %v846
    %912 = vst.msk [vmem:[%s4 + $0x14] sm:$0xf] %vm906, %v847
    %913 = vst.msk [vmem:[%s4 + $0x18] sm:$0xf] %vm906, %v848
    %914 = vst.msk [vmem:[%s4 + $0x1c] sm:$0xf] %vm906, %v849
    %915 = vst.msk [vmem:[%s4 + $0x20] sm:$0xf] %vm906, %v850
    %916 = vst.msk [vmem:[%s4 + $0x24] sm:$0xf] %vm906, %v851
    %917 = vst.msk [vmem:[%s4 + $0x28] sm:$0xf] %vm906, %v852
    %918 = vst.msk [vmem:[%s4 + $0x2c] sm:$0xf] %vm906, %v853
    %919 = vst.msk [vmem:[%s4 + $0x30] sm:$0xf] %vm906, %v854
    %920 = vst.msk [vmem:[%s4 + $0x34] sm:$0xf] %vm906, %v855
    %921 = vst.msk [vmem:[%s4 + $0x38] sm:$0xf] %vm906, %v856
    %922 = vst.msk [vmem:[%s4 + $0x3c] sm:$0xf] %vm906, %v857
    %923 = vst.msk [vmem:[%s4 + $0x40] sm:$0xf] %vm906, %v858
    %924 = vst.msk [vmem:[%s4 + $0x44] sm:$0xf] %vm906, %v859
    %925 = vst.msk [vmem:[%s4 + $0x48] sm:$0xf] %vm906, %v860
    %926 = vst.msk [vmem:[%s4 + $0x4c] sm:$0xf] %vm906, %v861
    %927 = vst.msk [vmem:[%s4 + $0x50] sm:$0xf] %vm906, %v862
    %928 = vst.msk [vmem:[%s4 + $0x54] sm:$0xf] %vm906, %v863
    %929 = vst.msk [vmem:[%s4 + $0x58] sm:$0xf] %vm906, %v864
    %930 = vst.msk [vmem:[%s4 + $0x5c] sm:$0xf] %vm906, %v865
    %931 = vst.msk [vmem:[%s4 + $0x60] sm:$0xf] %vm906, %v866
    %932 = vst.msk [vmem:[%s4 + $0x64] sm:$0xf] %vm906, %v867
    %933 = vst.msk [vmem:[%s4 + $0x68] sm:$0xf] %vm906, %v868
    %934 = vst.msk [vmem:[%s4 + $0x6c] sm:$0xf] %vm906, %v869
    %935 = vst.msk [vmem:[%s4 + $0x70] sm:$0xf] %vm906, %v870
    %936 = vst.msk [vmem:[%s4 + $0x74] sm:$0xf] %vm906, %v871
    %937 = vst.msk [vmem:[%s4 + $0x78] sm:$0xf] %vm906, %v872
    %938 = vst.msk [vmem:[%s4 + $0x7c] sm:$0xf] %vm906, %v873
  $region25: #{pallas_matmul_affine.1} parent=0 // pred_fallthru
    _
  // Predicated region
  $region26: #{pallas_matmul_affine.1} parent=0 // pred_check
    _
  $region27: #{pallas_matmul_affine.1} parent=0 // pred_check_branch
    %940 = sbr.rel (0) target = $region29
  $region28: #{pallas_matmul_affine.1} parent=0 // pred_region
    _
  $region29: #{pallas_matmul_affine.1} parent=0 // pred_fallthru
    _
  // Predicated region
  $region30: #{pallas_matmul_affine.1} parent=0 // pred_check
    _
  $region31: #{pallas_matmul_affine.1} parent=0 // pred_check_branch
    %942 = sbr.rel (0) target = $region33
  $region32: #{pallas_matmul_affine.1} parent=0 // pred_region
    _
  $region33: #{pallas_matmul_affine.1} parent=0 // pred_fallthru
    _

</llo_original>
